<compile_context>
chip_gen: v6e
topology: v6e:2x2x1
jax: 0.10.0
libtpu: 0.0.40
codegen_flags: <defaults>
</compile_context>

<pallas_src>
import jax
import jax.numpy as jnp
from jax.experimental import pallas as pl
from jax.experimental.pallas import tpu as pltpu


def _round_up(x, m):
    return (x + m - 1) // m * m


def _cdiv(a, b):
    return (a + b - 1) // b


def _default_elementwise_dtype():
    # v5e has no bf16 VPU/EUP -> keep elementwise work in f32 there.
    try:
        kind = jax.devices()[0].device_kind.lower()
    except Exception:
        return jnp.float32
    if "v5" in kind:
        return jnp.float32
    return jnp.bfloat16


def ffwd_kernel(x_ref, w1_ref, b1_ref, w2_ref, b2_ref, o_ref, acc_ref):
    # x_ref : (tm, Cp)  compute_dtype (bf16)      -- resident across k
    # w1_ref: (Cp, tk)  compute_dtype             -- streamed over k
    # b1_ref: (1, tk)   elementwise dtype
    # w2_ref: (tk, Cp)  compute_dtype             -- streamed over k
    # b2_ref: (1, Cp)   f32
    # o_ref : (tm, Cp)  out dtype                 -- resident across k
    # acc_ref:(tm, Cp)  f32 scratch accumulator
    k = pl.program_id(1)

    @pl.when(k == 0)
    def _init():
        acc_ref[...] = jnp.zeros_like(acc_ref)

    # First matmul chunk: (tm, Cp) @ (Cp, tk) with f32 MXU accumulation.
    h = jnp.dot(x_ref[...], w1_ref[...], preferred_element_type=jnp.float32)
    # Bias + ReLU in the elementwise dtype carried by b1 (bf16 on v6e/v7x,
    # f32 on v5e).  Per-chunk is exact: ReLU acts elementwise over H.
    h = jnp.maximum(h.astype(b1_ref.dtype) + b1_ref[...], 0.0)
    # Second matmul chunk accumulates into the f32 scratch.
    acc_ref[...] += jnp.dot(h.astype(w2_ref.dtype), w2_ref[...],
                            preferred_element_type=jnp.float32)

    @pl.when(k == pl.num_programs(1) - 1)
    def _finalize():
        o_ref[...] = (acc_ref[...] + b2_ref[...]).astype(o_ref.dtype)
    # TODO(synk): training-mode Dropout(p=0.2) (pltpu.prng_seed +
    # pltpu.prng_random_bits mask with 1/(1-p) scaling) not emitted; this
    # implements eval/inference semantics (identity), matching module.eval().


def _maybe_pad_cast_2d(a, rows, cols, dtype):
    pr, pc = rows - a.shape[0], cols - a.shape[1]
    if pr or pc:
        a = jnp.pad(a, ((0, pr), (0, pc)))
    return a if a.dtype == dtype else a.astype(dtype)


def feed_forward(x, w1, b1, w2, b2, *, tm=512, tk=512,
                 compute_dtype=jnp.bfloat16, out_dtype=None,
                 elementwise_dtype=None):
    """x: (B, T, C). w1: (C, 4C), b1: (4C,), w2: (4C, C), b2: (C,)."""
    B, T, C = x.shape
    H = w1.shape[1]          # 4 * C
    M = B * T
    out_dtype = x.dtype if out_dtype is None else jnp.dtype(out_dtype)
    if elementwise_dtype is None:
        elementwise_dtype = _default_elementwise_dtype()

    # Lane-dense feature dims (multiples of 128); zero padding preserves math
    # (padded hidden columns have zero weights and zero bias -> relu(0)=0 ->
    #  contribute nothing to the second matmul).
    Cp = _round_up(C, 128)
    tk_eff = min(_round_up(tk, 128), _round_up(H, 128))
    Hp = _round_up(_round_up(H, 128), tk_eff)

    # Row tile: multiple of 16 (bf16 sublane packing), capped by M.
    tm_eff = min(_round_up(tm, 16), _round_up(M, 16))
    # Ensure >= 2 row tiles so both v7x TensorCores get grid steps.
    if _cdiv(M, tm_eff) < 2 and M >= 32:
        tm_eff = _round_up(_cdiv(M, 2), 16)
    Mp = _round_up(M, tm_eff)

    x2d = _maybe_pad_cast_2d(x.reshape(M, C), Mp, Cp, compute_dtype)
    # NOTE: for best throughput, pre-pad/cast the weights once outside the
    # training/inference step; done here for a self-contained example (skipped
    # automatically when shapes/dtypes already match).
    w1p = _maybe_pad_cast_2d(w1, Cp, Hp, compute_dtype)
    w2p = _maybe_pad_cast_2d(w2, Hp, Cp, compute_dtype)
    b1p = _maybe_pad_cast_2d(b1.reshape(1, H), 1, Hp, elementwise_dtype)
    b2p = _maybe_pad_cast_2d(b2.reshape(1, C), 1, Cp, jnp.float32)

    c_item = jnp.dtype(compute_dtype).itemsize
    o_item = out_dtype.itemsize

    # Actual per-step VMEM footprint (double buffers + scratch + intermediate).
    footprint = (
        2 * tm_eff * Cp * c_item          # x tile (double-buffered)
        + 2 * tm_eff * Cp * o_item        # out tile (double-buffered)
        + 2 * Cp * tk_eff * c_item        # W1 chunk (double-buffered)
        + 2 * tk_eff * Cp * c_item        # W2 chunk (double-buffered)
        + 2 * tk_eff * 4 + 2 * Cp * 4     # biases
        + tm_eff * Cp * 4                 # f32 accumulator scratch
        + tm_eff * tk_eff * 4             # h intermediate
    )
    vmem_limit = int(min(max(2 * footprint + 4 * 1024 * 1024,
                             24 * 1024 * 1024),
                         56 * 1024 * 1024))

    cost = pl.CostEstimate(
        flops=4 * M * C * H,
        transcendentals=0,
        bytes_accessed=(M * C * c_item + C * H * c_item + H * C * c_item
                        + H * 4 + C * 4 + M * C * o_item),
    )

    out = pl.pallas_call(
        ffwd_kernel,
        out_shape=jax.ShapeDtypeStruct((Mp, Cp), out_dtype),
        grid_spec=pltpu.PrefetchScalarGridSpec(
            num_scalar_prefetch=0,
            grid=(Mp // tm_eff, Hp // tk_eff),      # reduction axis last
            in_specs=[
                pl.BlockSpec((tm_eff, Cp), lambda i, k: (i, 0)),  # x row tile
                pl.BlockSpec((Cp, tk_eff), lambda i, k: (0, k)),  # W1 chunk
                pl.BlockSpec((1, tk_eff), lambda i, k: (0, k)),   # b1 chunk
                pl.BlockSpec((tk_eff, Cp), lambda i, k: (k, 0)),  # W2 chunk
                pl.BlockSpec((1, Cp), lambda i, k: (0, 0)),       # b2
            ],
            out_specs=pl.BlockSpec((tm_eff, Cp), lambda i, k: (i, 0)),
            scratch_shapes=[pltpu.VMEM((tm_eff, Cp), jnp.float32)],
        ),
        compiler_params=pltpu.CompilerParams(
            dimension_semantics=("parallel", "arbitrary"),
            vmem_limit_bytes=vmem_limit,
        ),
        cost_estimate=cost,
    )(x2d, w1p, b1p, w2p, b2p)

    return out[:M, :C].reshape(B, T, C)


def _reference(x, w1, b1, w2, b2):
    h = jnp.maximum(x @ w1 + b1, 0.0)
    return h @ w2 + b2


if __name__ == "__main__":
    # Small shapes consistent with the module's forward: (B, T, n_embd)
    B, T, n_embd = 2, 8, 32
    hidden = 4 * n_embd

    key = jax.random.PRNGKey(0)
    kx, k1, k2, k3, k4 = jax.random.split(key, 5)

    x = jax.random.normal(kx, (B, T, n_embd), dtype=jnp.float32)

    # Deterministic parameter init (PyTorch Linear-style uniform bounds).
    bound1 = 1.0 / (n_embd ** 0.5)
    bound2 = 1.0 / (hidden ** 0.5)
    w1 = jax.random.uniform(k1, (n_embd, hidden), jnp.float32, -bound1, bound1)
    b1 = jax.random.uniform(k2, (hidden,), jnp.float32, -bound1, bound1)
    w2 = jax.random.uniform(k3, (hidden, n_embd), jnp.float32, -bound2, bound2)
    b2 = jax.random.uniform(k4, (n_embd,), jnp.float32, -bound2, bound2)

    out = feed_forward(x, w1, b1, w2, b2)
    out = jax.block_until_ready(out)

    ref = _reference(x, w1, b1, w2, b2)
    assert out.shape == (B, T, n_embd)
    # bf16 MXU inputs with f32 accumulation: compare at bf16-level tolerance.
    err = float(jnp.max(jnp.abs(out - ref)))
    assert jnp.allclose(out, ref, atol=5e-2, rtol=5e-2), f"max abs err {err}"

    print("KERNEL_OK")
</pallas_src>

<mosaic_0001>
module attributes {stable_mosaic.version = 11 : i64} {
  func.func @ffwd_kernel(%arg0: i32, %arg1: i32, %arg2: memref<16x128xbf16, #tpu.memory_space<vmem>>, %arg3: memref<128x128xbf16, #tpu.memory_space<vmem>>, %arg4: memref<1x128xbf16, #tpu.memory_space<vmem>>, %arg5: memref<128x128xbf16, #tpu.memory_space<vmem>>, %arg6: memref<1x128xf32, #tpu.memory_space<vmem>>, %arg7: memref<16x128xf32, #tpu.memory_space<vmem>>, %arg8: memref<16x128xf32, #tpu.memory_space<vmem>>) attributes {dimension_semantics = [#tpu.dimension_semantics<parallel>, #tpu.dimension_semantics<arbitrary>], iteration_bounds = array<i64: 1, 1>, scalar_prefetch = 0 : i64, scratch_operands = 1 : i64, tpu.core_type = #tpu.core_type<tc>, window_params = [{transform_indices = @transform_0, window_bounds = array<i64: 16, 128>}, {transform_indices = @transform_1, window_bounds = array<i64: 128, 128>}, {transform_indices = @transform_2, window_bounds = array<i64: 1, 128>}, {transform_indices = @transform_3, window_bounds = array<i64: 128, 128>}, {pipeline_mode = #tpu.pipeline_mode<synchronous>, transform_indices = @transform_4, window_bounds = array<i64: 1, 128>}, {transform_indices = @transform_5, window_bounds = array<i64: 16, 128>}]} {
    %c0_i32 = arith.constant 0 : i32
    %0 = arith.cmpi eq, %arg1, %c0_i32 : i32
    %1 = arith.extui %0 : i1 to i32
    %c0_i32_0 = arith.constant 0 : i32
    %2 = arith.cmpi ne, %1, %c0_i32_0 : i32
    scf.if %2 {
      %cst_16 = arith.constant 0.000000e+00 : f32
      %20 = vector.broadcast %cst_16 : f32 to vector<16x128xf32>
      %c0_17 = arith.constant 0 : index
      %c0_18 = arith.constant 0 : index
      %21 = vector.load %arg8[%c0_17, %c0_18] : memref<16x128xf32, #tpu.memory_space<vmem>>, vector<16x128xf32>
      tpu.vector_store %arg8[%c0_17, %c0_18], %20 {strides = array<i32>} : memref<16x128xf32, #tpu.memory_space<vmem>>, vector<16x128xf32>,
    } else {
    }
    %c0 = arith.constant 0 : index
    %c0_1 = arith.constant 0 : index
    %3 = vector.load %arg2[%c0, %c0_1] : memref<16x128xbf16, #tpu.memory_space<vmem>>, vector<16x128xbf16>
    %c0_2 = arith.constant 0 : index
    %c0_3 = arith.constant 0 : index
    %4 = vector.load %arg3[%c0_2, %c0_3] : memref<128x128xbf16, #tpu.memory_space<vmem>>, vector<128x128xbf16>
    %cst = arith.constant dense<0.000000e+00> : vector<16x128xf32>
    %5 = tpu.matmul %3, %4, %cst {dimension_numbers = #tpu.dot_dimension_numbers<[1], [0], [0], [1], [0, 0, 1, 1], [], []>} : vector<16x128xbf16>, vector<128x128xbf16>, vector<16x128xf32> -> vector<16x128xf32>
    %6 = arith.truncf %5 : vector<16x128xf32> to vector<16x128xbf16>
    %c0_4 = arith.constant 0 : index
    %c0_5 = arith.constant 0 : index
    %7 = vector.load %arg4[%c0_4, %c0_5] : memref<1x128xbf16, #tpu.memory_space<vmem>>, vector<1x128xbf16>
    %8 = vector.broadcast %7 : vector<1x128xbf16> to vector<16x128xbf16>
    %9 = arith.addf %6, %8 : vector<16x128xbf16>
    %cst_6 = arith.constant 0.000000e+00 : bf16
    %10 = vector.broadcast %cst_6 : bf16 to vector<16x128xbf16>
    %11 = arith.maximumf %9, %10 : vector<16x128xbf16>
    %c0_7 = arith.constant 0 : index
    %c0_8 = arith.constant 0 : index
    %12 = vector.load %arg8[%c0_7, %c0_8] : memref<16x128xf32, #tpu.memory_space<vmem>>, vector<16x128xf32>
    %c0_9 = arith.constant 0 : index
    %c0_10 = arith.constant 0 : index
    %13 = vector.load %arg5[%c0_9, %c0_10] : memref<128x128xbf16, #tpu.memory_space<vmem>>, vector<128x128xbf16>
    %cst_11 = arith.constant dense<0.000000e+00> : vector<16x128xf32>
    %14 = tpu.matmul %11, %13, %cst_11 {dimension_numbers = #tpu.dot_dimension_numbers<[1], [0], [0], [1], [0, 0, 1, 1], [], []>} : vector<16x128xbf16>, vector<128x128xbf16>, vector<16x128xf32> -> vector<16x128xf32>
    %15 = arith.addf %12, %14 : vector<16x128xf32>
    %c0_12 = arith.constant 0 : index
    %c0_13 = arith.constant 0 : index
    %16 = vector.load %arg8[%c0_12, %c0_13] : memref<16x128xf32, #tpu.memory_space<vmem>>, vector<16x128xf32>
    tpu.vector_store %arg8[%c0_12, %c0_13], %15 {strides = array<i32>} : memref<16x128xf32, #tpu.memory_space<vmem>>, vector<16x128xf32>,
    %c0_i32_14 = arith.constant 0 : i32
    %17 = arith.cmpi eq, %arg1, %c0_i32_14 : i32
    %18 = arith.extui %17 : i1 to i32
    %c0_i32_15 = arith.constant 0 : i32
    %19 = arith.cmpi ne, %18, %c0_i32_15 : i32
    scf.if %19 {
      %c0_16 = arith.constant 0 : index
      %c0_17 = arith.constant 0 : index
      %20 = vector.load %arg8[%c0_16, %c0_17] : memref<16x128xf32, #tpu.memory_space<vmem>>, vector<16x128xf32>
      %c0_18 = arith.constant 0 : index
      %c0_19 = arith.constant 0 : index
      %21 = vector.load %arg6[%c0_18, %c0_19] : memref<1x128xf32, #tpu.memory_space<vmem>>, vector<1x128xf32>
      %22 = vector.broadcast %21 : vector<1x128xf32> to vector<16x128xf32>
      %23 = arith.addf %20, %22 : vector<16x128xf32>
      %c0_20 = arith.constant 0 : index
      %c0_21 = arith.constant 0 : index
      %24 = vector.load %arg7[%c0_20, %c0_21] : memref<16x128xf32, #tpu.memory_space<vmem>>, vector<16x128xf32>
      tpu.vector_store %arg7[%c0_20, %c0_21], %23 {strides = array<i32>} : memref<16x128xf32, #tpu.memory_space<vmem>>, vector<16x128xf32>,
    } else {
    }
    return
  }
  func.func @transform_0(%arg0: i32, %arg1: i32) -> (i32, i32) {
    %c0_i32 = arith.constant 0 : i32
    %c0_i32_0 = arith.constant 0 : i32
    return %arg0, %c0_i32 : i32, i32
  }
  func.func @transform_1(%arg0: i32, %arg1: i32) -> (i32, i32) {
    %c0_i32 = arith.constant 0 : i32
    %c0_i32_0 = arith.constant 0 : i32
    return %c0_i32, %arg1 : i32, i32
  }
  func.func @transform_2(%arg0: i32, %arg1: i32) -> (i32, i32) {
    %c0_i32 = arith.constant 0 : i32
    %c0_i32_0 = arith.constant 0 : i32
    return %c0_i32, %arg1 : i32, i32
  }
  func.func @transform_3(%arg0: i32, %arg1: i32) -> (i32, i32) {
    %c0_i32 = arith.constant 0 : i32
    %c0_i32_0 = arith.constant 0 : i32
    return %arg1, %c0_i32 : i32, i32
  }
  func.func @transform_4(%arg0: i32, %arg1: i32) -> (i32, i32) {
    %c0_i32 = arith.constant 0 : i32
    %c0_i32_0 = arith.constant 0 : i32
    %c0_i32_1 = arith.constant 0 : i32
    return %c0_i32, %c0_i32_0 : i32, i32
  }
  func.func @transform_5(%arg0: i32, %arg1: i32) -> (i32, i32) {
    %c0_i32 = arith.constant 0 : i32
    %c0_i32_0 = arith.constant 0 : i32
    return %arg0, %c0_i32 : i32, i32
  }
}

</mosaic_0001>

<llo_original>
// kernel: tpu_custom_call.1
$region0: #{tpu_custom_call.1}
  #allocation0 [shape = 'u32[]', space=smem, size = 0x4, offset = 0x4, fixed_abs, tag = 'smem constant byte address 0x4 - core index']
  #allocation1 [shape = 'u32[144,128]{1,0:T(1,128)}', space=vmem, size = 0x12000, scoped, tag = 'internal scratch']
  #allocation2 [shape = 'f32[16,128]{1,0:T(8,128)}', space=vmem, size = 0x2000, scoped, tag = 'scratch operand']
  %s0 = inlined_call_operand.hbm [shape: bf16[16,128], index: 0, kind: input, shape index: {}]
  %s1 = inlined_call_operand.hbm [shape: bf16[128,128], index: 1, kind: input, shape index: {}]
  %s2 = inlined_call_operand.vmem [shape: bf16[1,128], index: 2, kind: input, shape index: {}]
  %s3 = inlined_call_operand.hbm [shape: bf16[128,128], index: 3, kind: input, shape index: {}]
  %s4 = inlined_call_operand.vmem [shape: f32[1,128], index: 4, kind: input, shape index: {}]
  %s5 = inlined_call_operand.hbm [shape: f32[16,128], index: 5, kind: output, shape index: {}]
  %s6 = sld [smem:[#allocation0]]
  $region50: #{tpu_custom_call.1} parent=0
    _
  %s8 = ssub.s32 1, %s6
  %s9 = scalar_select 0, %s8, %s6
  $region1: #{tpu_custom_call.1} parent=0
    #allocation3 [shape = 'u8[4096]{0}', space=vmem, size = 0x1000, scoped, tag = 'input window, operand 0, single buffered']
    #allocation4 [shape = 's32[1]{0}', space=sflag, size = 0x4, scoped, tag = 'scoped memory for tpu_custom_call.1']
    #allocation5 [shape = 's32[1]{0}', space=sflag, size = 0x4, scoped, tag = 'scoped memory for tpu_custom_call.1']
    #allocation6 [shape = 'u8[32768]{0}', space=vmem, size = 0x8000, scoped, tag = 'input window, operand 1, single buffered']
    #allocation7 [shape = 's32[1]{0}', space=sflag, size = 0x4, scoped, tag = 'scoped memory for tpu_custom_call.1']
    #allocation8 [shape = 'u8[32768]{0}', space=vmem, size = 0x8000, scoped, tag = 'input window, operand 3, single buffered']
    #allocation9 [shape = 'u8[8192]{0}', space=vmem, size = 0x2000, scoped, tag = 'output window, operand 0, single buffered']
    %10 = vsyncpa [#allocation4], 0
    %11 = vsyncpa [#allocation7], 0
    %12 = vsyncpa [#allocation5], 0
    // Predicated region
    $region2: #{tpu_custom_call.1} parent=1 // pred_check
      _
    $region3: #{tpu_custom_call.1} parent=1 // pred_check_branch
      %14 = sbr.rel (0) target = $region5
    $region4: #{tpu_custom_call.1} parent=1 // pred_region
      %s16 = ssub.s32 128, 128
      %17 = vsyncadd [#allocation4], %s16
      %s18 = sshll.u32 [#allocation3], 4
      %s19 = int_to_ptr.vmem [resolvable:$true] %s18
      %24 = dma.hbm_to_vmem [thread:$0]  %s0, 128, %s19, [#allocation4], 64, 64, 4
    $region5: #{tpu_custom_call.1} parent=1 // pred_fallthru
      _
    // Predicated region
    $region6: #{tpu_custom_call.1} parent=1 // pred_check
      _
    $region7: #{tpu_custom_call.1} parent=1 // pred_check_branch
      %26 = sbr.rel (0) target = $region9
    $region8: #{tpu_custom_call.1} parent=1 // pred_region
      %s28 = ssub.s32 1024, 1024
      %29 = vsyncadd [#allocation7], %s28
      %s30 = sshll.u32 [#allocation6], 4
      %s31 = int_to_ptr.vmem [resolvable:$true] %s30
      %36 = dma.hbm_to_vmem [thread:$0]  %s1, 1024, %s31, [#allocation7], 64, 64, 4
    $region9: #{tpu_custom_call.1} parent=1 // pred_fallthru
      _
    // Predicated region
    $region10: #{tpu_custom_call.1} parent=1 // pred_check
      _
    $region11: #{tpu_custom_call.1} parent=1 // pred_check_branch
      %38 = sbr.rel (0) target = $region13
    $region12: #{tpu_custom_call.1} parent=1 // pred_region
      _
    $region13: #{tpu_custom_call.1} parent=1 // pred_fallthru
      _
    // Predicated region
    $region14: #{tpu_custom_call.1} parent=1 // pred_check
      _
    $region15: #{tpu_custom_call.1} parent=1 // pred_check_branch
      %40 = sbr.rel (0) target = $region17
    $region16: #{tpu_custom_call.1} parent=1 // pred_region
      %s42 = ssub.s32 1024, 1024
      %43 = vsyncadd [#allocation7], %s42
      %s44 = sshll.u32 [#allocation8], 4
      %s45 = int_to_ptr.vmem [resolvable:$true] %s44
      %50 = dma.hbm_to_vmem [thread:$0]  %s3, 1024, %s45, [#allocation7], 64, 64, 4
    $region17: #{tpu_custom_call.1} parent=1 // pred_fallthru
      _
    // Predicated region
    $region18: #{tpu_custom_call.1} parent=1 // pred_check
      _
    $region19: #{tpu_custom_call.1} parent=1 // pred_check_branch
      %52 = sbr.rel (0) target = $region21
    $region20: #{tpu_custom_call.1} parent=1 // pred_region
      _
    $region21: #{tpu_custom_call.1} parent=1 // pred_fallthru
      _
    // Predicated region
    $region22: #{tpu_custom_call.1} parent=1 // pred_check
      _
    $region23: #{tpu_custom_call.1} parent=1 // pred_check_branch
      %54 = sbr.rel (0) target = $region25
    $region24: #{tpu_custom_call.1} parent=1 // pred_region
      %55 = dma.done [#allocation4], 128
    $region25: #{tpu_custom_call.1} parent=1 // pred_fallthru
      _
    // Predicated region
    $region26: #{tpu_custom_call.1} parent=1 // pred_check
      _
    $region27: #{tpu_custom_call.1} parent=1 // pred_check_branch
      %57 = sbr.rel (0) target = $region29
    $region28: #{tpu_custom_call.1} parent=1 // pred_region
      %58 = dma.done [#allocation7], 1024
    $region29: #{tpu_custom_call.1} parent=1 // pred_fallthru
      _
    // Predicated region
    $region30: #{tpu_custom_call.1} parent=1 // pred_check
      _
    $region31: #{tpu_custom_call.1} parent=1 // pred_check_branch
      %60 = sbr.rel (0) target = $region33
    $region32: #{tpu_custom_call.1} parent=1 // pred_region
      %61 = dma.done [#allocation7], 1024
    $region33: #{tpu_custom_call.1} parent=1 // pred_fallthru
      _
    %p63 = scmp.eq.s32.totalorder 0, 0
    // Predicated region
    $region34: #{tpu_custom_call.1} parent=1 // pred_check
      %p64 = pneg %p63
    $region35: #{tpu_custom_call.1} parent=1 // pred_check_branch
      %66 = sbr.rel (%p64) target = $region37
    $region36: #{tpu_custom_call.1} parent=1 // pred_region
      %67 = vst [vmem:[#allocation2] sm:$0xff] 0.0
      %68 = vst [vmem:[#allocation2 + $0x8] sm:$0xff] 0.0
    $region37: #{tpu_custom_call.1} parent=1 // pred_fallthru
      _
    %v69 = vld [vmem:[#allocation3] sm:$0xf]
    %v70 = vld [vmem:[#allocation3 + $0x4] sm:$0xf]
    %v71 = vld [vmem:[#allocation6] sm:$0xf]
    %v72 = vld [vmem:[#allocation6 + $0x4] sm:$0xf]
    %v73 = vld [vmem:[#allocation6 + $0x8] sm:$0xf]
    %v74 = vld [vmem:[#allocation6 + $0xc] sm:$0xf]
    %v75 = vld [vmem:[#allocation6 + $0x10] sm:$0xf]
    %v76 = vld [vmem:[#allocation6 + $0x14] sm:$0xf]
    %v77 = vld [vmem:[#allocation6 + $0x18] sm:$0xf]
    %v78 = vld [vmem:[#allocation6 + $0x1c] sm:$0xf]
    %v79 = vld [vmem:[#allocation6 + $0x20] sm:$0xf]
    %v80 = vld [vmem:[#allocation6 + $0x24] sm:$0xf]
    %v81 = vld [vmem:[#allocation6 + $0x28] sm:$0xf]
    %v82 = vld [vmem:[#allocation6 + $0x2c] sm:$0xf]
    %v83 = vld [vmem:[#allocation6 + $0x30] sm:$0xf]
    %v84 = vld [vmem:[#allocation6 + $0x34] sm:$0xf]
    %v85 = vld [vmem:[#allocation6 + $0x38] sm:$0xf]
    %v86 = vld [vmem:[#allocation6 + $0x3c] sm:$0xf]
    %v89 = vunpack.c.l.b16 %v69
    %v90 = vunpack.c.l.b16 %v70
    %v91 = vpack.c.b16 %v90, %v89
    %v109 = vunpack.c.l.b16 %v71
    %v110 = vunpack.c.l.b16 %v72
    %v111 = vunpack.c.l.b16 %v73
    %v112 = vunpack.c.l.b16 %v74
    %v113 = vunpack.c.l.b16 %v75
    %v114 = vunpack.c.l.b16 %v76
    %v115 = vunpack.c.l.b16 %v77
    %v116 = vunpack.c.l.b16 %v78
    %v117 = vunpack.c.l.b16 %v79
    %v118 = vunpack.c.l.b16 %v80
    %v119 = vunpack.c.l.b16 %v81
    %v120 = vunpack.c.l.b16 %v82
    %v121 = vunpack.c.l.b16 %v83
    %v122 = vunpack.c.l.b16 %v84
    %v123 = vunpack.c.l.b16 %v85
    %v124 = vunpack.c.l.b16 %v86
    %v125 = vpack.c.b16 %v110, %v109
    %v126 = vpack.c.b16 %v112, %v111
    %v127 = vpack.c.b16 %v114, %v113
    %v128 = vpack.c.b16 %v116, %v115
    %v129 = vpack.c.b16 %v118, %v117
    %v130 = vpack.c.b16 %v120, %v119
    %v131 = vpack.c.b16 %v122, %v121
    %v132 = vpack.c.b16 %v124, %v123
    %141 = vmatprep.subr.bf16.mxu0 0
    %142 = vmatpush1.bf16.msra.mxu0 %v132
    %143 = vmatprep.subr.bf16.mxu0 0
    %144 = vmatpush1.bf16.msra.mxu0 %v131
    %145 = vmatprep.subr.bf16.mxu0 0
    %146 = vmatpush1.bf16.msra.mxu0 %v130
    %147 = vmatprep.subr.bf16.mxu0 0
    %148 = vmatpush1.bf16.msra.mxu0 %v129
    %149 = vmatprep.subr.bf16.mxu0 0
    %150 = vmatpush1.bf16.msra.mxu0 %v128
    %151 = vmatprep.subr.bf16.mxu0 0
    %152 = vmatpush1.bf16.msra.mxu0 %v127
    %153 = vmatprep.subr.bf16.mxu0 0
    %154 = vmatpush1.bf16.msra.mxu0 %v126
    %155 = vmatprep.subr.bf16.mxu0 0
    %156 = vmatpush1.bf16.msra.mxu0 %v125
    %157 = vmatprep.subr.bf16.mxu0 0
    %158 = vmatpush2.bf16.msra.mxu0 0
    %159 = vmatprep.subr.bf16.mxu0 0
    %160 = vmatpush2.bf16.msra.mxu0 0
    %161 = vmatprep.subr.bf16.mxu0 0
    %162 = vmatpush2.bf16.msra.mxu0 0
    %163 = vmatprep.subr.bf16.mxu0 0
    %164 = vmatpush2.bf16.msra.mxu0 0
    %165 = vmatprep.subr.bf16.mxu0 0
    %166 = vmatpush2.bf16.msra.mxu0 0
    %167 = vmatprep.subr.bf16.mxu0 0
    %168 = vmatpush2.bf16.msra.mxu0 0
    %169 = vmatprep.subr.bf16.mxu0 0
    %170 = vmatpush2.bf16.msra.mxu0 0
    %171 = vmatprep.subr.bf16.mxu0 0
    %172 = vmatpush2.bf16.msra.mxu0 0
    %173 = vmatprep.mubr.bf16.mxu0 0
    %174 = vmatmul.mubr.bf16.gmra.mxu0 %v91
    %v175 = vpop.f32.mrf.mxu0
    %v176 = vadd.f32 0.0, %v175
    %v177 = vpop.f32.mrf.mxu0
    %v178 = vpop.f32.mrf.mxu0
    %v179 = vadd.f32 0.0, %v178
    %v180 = vpop.f32.mrf.mxu0
    %181 = vdwg.mxu0
    %v182 = vpack.c.bf16 %v179, %v176
    %v183 = vld [vmem:[%s2] sm:$0x1]
    %v185 = vpack.i.b16 %v183, %v183
    %v187 = vlaneseq
    %v188 = vshrl.u32 %v187, 7
    %v189 = vsub.s32 0, %v188
    %v190 = vrot.slane %v185, %v189
    %v191 = vadd.bf16 %v182, %v190
    %v192 = vmax.bf16 %v191, 0
    %v193 = vld [vmem:[#allocation2] sm:$0xff]
    %v194 = vld [vmem:[#allocation2 + $0x8] sm:$0xff]
    %v195 = vld [vmem:[#allocation8] sm:$0xf]
    %v196 = vld [vmem:[#allocation8 + $0x4] sm:$0xf]
    %v197 = vld [vmem:[#allocation8 + $0x8] sm:$0xf]
    %v198 = vld [vmem:[#allocation8 + $0xc] sm:$0xf]
    %v199 = vld [vmem:[#allocation8 + $0x10] sm:$0xf]
    %v200 = vld [vmem:[#allocation8 + $0x14] sm:$0xf]
    %v201 = vld [vmem:[#allocation8 + $0x18] sm:$0xf]
    %v202 = vld [vmem:[#allocation8 + $0x1c] sm:$0xf]
    %v203 = vld [vmem:[#allocation8 + $0x20] sm:$0xf]
    %v204 = vld [vmem:[#allocation8 + $0x24] sm:$0xf]
    %v205 = vld [vmem:[#allocation8 + $0x28] sm:$0xf]
    %v206 = vld [vmem:[#allocation8 + $0x2c] sm:$0xf]
    %v207 = vld [vmem:[#allocation8 + $0x30] sm:$0xf]
    %v208 = vld [vmem:[#allocation8 + $0x34] sm:$0xf]
    %v209 = vld [vmem:[#allocation8 + $0x38] sm:$0xf]
    %v210 = vld [vmem:[#allocation8 + $0x3c] sm:$0xf]
    %v227 = vunpack.c.l.b16 %v195
    %v228 = vunpack.c.l.b16 %v196
    %v229 = vunpack.c.l.b16 %v197
    %v230 = vunpack.c.l.b16 %v198
    %v231 = vunpack.c.l.b16 %v199
    %v232 = vunpack.c.l.b16 %v200
    %v233 = vunpack.c.l.b16 %v201
    %v234 = vunpack.c.l.b16 %v202
    %v235 = vunpack.c.l.b16 %v203
    %v236 = vunpack.c.l.b16 %v204
    %v237 = vunpack.c.l.b16 %v205
    %v238 = vunpack.c.l.b16 %v206
    %v239 = vunpack.c.l.b16 %v207
    %v240 = vunpack.c.l.b16 %v208
    %v241 = vunpack.c.l.b16 %v209
    %v242 = vunpack.c.l.b16 %v210
    %v243 = vpack.c.b16 %v228, %v227
    %v244 = vpack.c.b16 %v230, %v229
    %v245 = vpack.c.b16 %v232, %v231
    %v246 = vpack.c.b16 %v234, %v233
    %v247 = vpack.c.b16 %v236, %v235
    %v248 = vpack.c.b16 %v238, %v237
    %v249 = vpack.c.b16 %v240, %v239
    %v250 = vpack.c.b16 %v242, %v241
    %259 = vmatprep.subr.bf16.mxu0 0
    %260 = vmatpush1.bf16.msra.mxu0 %v250
    %261 = vmatprep.subr.bf16.mxu0 0
    %262 = vmatpush1.bf16.msra.mxu0 %v249
    %263 = vmatprep.subr.bf16.mxu0 0
    %264 = vmatpush1.bf16.msra.mxu0 %v248
    %265 = vmatprep.subr.bf16.mxu0 0
    %266 = vmatpush1.bf16.msra.mxu0 %v247
    %267 = vmatprep.subr.bf16.mxu0 0
    %268 = vmatpush1.bf16.msra.mxu0 %v246
    %269 = vmatprep.subr.bf16.mxu0 0
    %270 = vmatpush1.bf16.msra.mxu0 %v245
    %271 = vmatprep.subr.bf16.mxu0 0
    %272 = vmatpush1.bf16.msra.mxu0 %v244
    %273 = vmatprep.subr.bf16.mxu0 0
    %274 = vmatpush1.bf16.msra.mxu0 %v243
    %275 = vmatprep.subr.bf16.mxu0 0
    %276 = vmatpush2.bf16.msra.mxu0 0
    %277 = vmatprep.subr.bf16.mxu0 0
    %278 = vmatpush2.bf16.msra.mxu0 0
    %279 = vmatprep.subr.bf16.mxu0 0
    %280 = vmatpush2.bf16.msra.mxu0 0
    %281 = vmatprep.subr.bf16.mxu0 0
    %282 = vmatpush2.bf16.msra.mxu0 0
    %283 = vmatprep.subr.bf16.mxu0 0
    %284 = vmatpush2.bf16.msra.mxu0 0
    %285 = vmatprep.subr.bf16.mxu0 0
    %286 = vmatpush2.bf16.msra.mxu0 0
    %287 = vmatprep.subr.bf16.mxu0 0
    %288 = vmatpush2.bf16.msra.mxu0 0
    %289 = vmatprep.subr.bf16.mxu0 0
    %290 = vmatpush2.bf16.msra.mxu0 0
    %291 = vmatprep.mubr.bf16.mxu0 0
    %292 = vmatmul.mubr.bf16.gmra.mxu0 %v192
    %v293 = vpop.f32.mrf.mxu0
    %v294 = vadd.f32 0.0, %v293
    %v295 = vpop.f32.mrf.mxu0
    %v296 = vpop.f32.mrf.mxu0
    %v297 = vadd.f32 0.0, %v296
    %v298 = vpop.f32.mrf.mxu0
    %299 = vdwg.mxu0
    %v300 = vadd.f32 %v193, %v294
    %v301 = vadd.f32 %v194, %v297
    %302 = vst [vmem:[#allocation2] sm:$0xff] %v300
    %303 = vst [vmem:[#allocation2 + $0x8] sm:$0xff] %v301
    // Predicated region
    $region38: #{tpu_custom_call.1} parent=1 // pred_check
      %p304 = pneg %p63
    $region39: #{tpu_custom_call.1} parent=1 // pred_check_branch
      %306 = sbr.rel (%p304) target = $region41
    $region40: #{tpu_custom_call.1} parent=1 // pred_region
      %v307 = vld [vmem:[#allocation2] sm:$0xff]
      %v308 = vld [vmem:[#allocation2 + $0x8] sm:$0xff]
      %v309 = vld [vmem:[%s4] sm:$0x1]
      %v311 = vlaneseq
      %v312 = vshrl.u32 %v311, 7
      %v313 = vsub.s32 0, %v312
      %v314 = vrot.slane %v309, %v313
      %v316 = vadd.f32 %v307, %v314
      %v317 = vadd.f32 %v308, %v314
      %318 = vst [vmem:[#allocation9] sm:$0xff] %v316
      %319 = vst [vmem:[#allocation9 + $0x8] sm:$0xff] %v317
    $region41: #{tpu_custom_call.1} parent=1 // pred_fallthru
      _
    // Predicated region
    $region42: #{tpu_custom_call.1} parent=1 // pred_check
      _
    $region43: #{tpu_custom_call.1} parent=1 // pred_check_branch
      %321 = sbr.rel (0) target = $region45
    $region44: #{tpu_custom_call.1} parent=1 // pred_region
      %s323 = ssub.s32 256, 256
      %324 = vsyncadd [#allocation5], %s323
      %s325 = sshll.u32 [#allocation9], 4
      %s326 = int_to_ptr.vmem [resolvable:$true] %s325
      %331 = dma.vmem_to_hbm [thread:$0]  %s326, 256, %s5, [#allocation5], 128, 128, 8
    $region45: #{tpu_custom_call.1} parent=1 // pred_fallthru
      _
    // Predicated region
    $region46: #{tpu_custom_call.1} parent=1 // pred_check
      _
    $region47: #{tpu_custom_call.1} parent=1 // pred_check_branch
      %333 = sbr.rel (0) target = $region49
    $region48: #{tpu_custom_call.1} parent=1 // pred_region
      %334 = dma.done [#allocation5], 256
    $region49: #{tpu_custom_call.1} parent=1 // pred_fallthru
      _
    %335 = vsyncpa [#allocation4], 1
    %336 = vsyncpa [#allocation7], 1
    %337 = vsyncpa [#allocation5], 1

</llo_original>
